<compile_context>
chip_gen: v6e
topology: v6e:2x2x1
jax: 0.10.0
libtpu: 0.0.40
codegen_flags: <defaults>
</compile_context>

<pallas_src>
import functools

import jax
import jax.numpy as jnp
from jax.experimental import pallas as pl
from jax.experimental.pallas import tpu as pltpu

_SUBLANE = 8            # f32 sublane count
_MAX_BATCH_TILE = 1024  # per-step rows; kernel is mem/overhead bound, bigger is better


def _round_up(x, m):
    return (x + m - 1) // m * m


def _make_mlp_kernel(num_layers, softmax_output, compute_dtype):
    """Fused-MLP kernel body for a fixed number of Linear layers."""
    cast_lhs = jnp.dtype(compute_dtype) != jnp.dtype(jnp.float32)

    def kernel(*refs):
        # refs = (x_ref, w0, b0, w1, b1, ..., w_{L-1}, b_{L-1}, out_ref)
        x_ref = refs[0]
        out_ref = refs[-1]
        param_refs = refs[1:-1]

        h = x_ref[...].astype(jnp.float32)
        for li in range(num_layers):
            w_ref = param_refs[2 * li]
            b_ref = param_refs[2 * li + 1]
            lhs = h.astype(compute_dtype) if cast_lhs else h
            h = jnp.dot(lhs, w_ref[...], preferred_element_type=jnp.float32)
            h = h + b_ref[...].astype(jnp.float32)      # (1, out) broadcasts over batch
            if li < num_layers - 1:
                h = jnp.maximum(h, 0.0)                  # ReLU (activation_fn default)

        if softmax_output:
            # softmax over dim=1; no padded lanes exist, so no masking needed.
            m = jnp.max(h, axis=-1, keepdims=True)
            e = jnp.exp(h - m)
            denom = jnp.sum(e, axis=-1, keepdims=True)
            h = e * pl.reciprocal(denom, approx=True)    # EUP slot; VALU stays free

        out_ref[...] = h.astype(out_ref.dtype)

    return kernel


def prepare_params(weights, biases, param_dtype=jnp.float32):
    """One-time parameter preparation (call OUTSIDE jit / once per weight update).

    weights: list of (in_i, out_i) arrays (already transposed vs. PyTorch)
    biases:  list of (out_i,) or (1, out_i) arrays
    param_dtype: jnp.float32, or jnp.bfloat16 for bf16 weights with f32 MXU
                 accumulation (prefer f32 on v5e).
    """
    ws = tuple(jnp.asarray(w).astype(param_dtype) for w in weights)
    bs = tuple(jnp.asarray(b).astype(jnp.float32).reshape(1, -1) for b in biases)
    return ws, bs


def custom_network_forward(x, weights, biases, *, softmax_output=False,
                           block_batch=None):
    """Fused forward pass of CustomNetwork.

    x:       (B, layer_sizes[0]) float-like
    weights: tuple of (in_i, out_i) arrays from prepare_params
    biases:  tuple of (1, out_i) float32 arrays from prepare_params

    For tiny per-call batches (DQN inference), stack many states along axis 0
    and make ONE call: the batch grid amortizes launch/DMA overhead.
    """
    num_layers = len(weights)
    B, in_dim = x.shape
    out_dim = weights[-1].shape[1]
    compute_dtype = weights[0].dtype

    # ---- batch tiling: multiple of the f32 sublane, capped at 1024 rows ----
    if block_batch is None:
        TB = min(_round_up(B, _SUBLANE), _MAX_BATCH_TILE)
    else:
        TB = min(_round_up(block_batch, _SUBLANE), _MAX_BATCH_TILE)
    Bp = _round_up(B, TB)

    x = x.astype(jnp.float32)
    if Bp != B:
        # Only the batch axis is ever padded (<= TB-1 rows); features untouched.
        x = jnp.pad(x, ((0, Bp - B), (0, 0)))

    kernel = _make_mlp_kernel(num_layers, softmax_output, compute_dtype)

    grid = (Bp // TB,)
    # x streams through per grid step; weights/biases use a constant index_map
    # (full-array blocks) so they stay VMEM-resident across grid steps.
    in_specs = [pl.BlockSpec((TB, in_dim), lambda i: (i, 0))]
    operands = [x]
    for w, b in zip(weights, biases):
        in_specs.append(pl.BlockSpec(w.shape, lambda i: (0, 0)))
        in_specs.append(pl.BlockSpec(b.shape, lambda i: (0, 0)))
        operands.append(w)
        operands.append(b)
    # Compact output: last dim == full array dim (out_dim), no padded writeback.
    out_spec = pl.BlockSpec((TB, out_dim), lambda i: (i, 0))

    # ---- advisory cost estimate so XLA can schedule around the call ----
    dims = [in_dim] + [w.shape[1] for w in weights]
    flops = 2 * Bp * sum(dims[i] * dims[i + 1] for i in range(num_layers))
    transcendentals = Bp * out_dim if softmax_output else 0
    param_bytes = sum(int(a.size) * a.dtype.itemsize
                      for a in list(weights) + list(biases))
    bytes_accessed = Bp * in_dim * 4 + Bp * out_dim * 4 + param_bytes
    cost = pl.CostEstimate(flops=int(flops),
                           transcendentals=int(transcendentals),
                           bytes_accessed=int(bytes_accessed))

    # ---- tight VMEM budget: resident params + double-buffered x/out tiles
    #      + in-flight activations + 2 MiB slack (a few MiB total) ----
    io_tile_bytes = 2 * (TB * in_dim + TB * out_dim) * 4     # double-buffered I/O
    act_bytes = 2 * TB * max(dims) * 4                       # in-flight activations
    vmem_limit = int(param_bytes + io_tile_bytes + act_bytes + (2 << 20))

    out = pl.pallas_call(
        kernel,
        out_shape=jax.ShapeDtypeStruct((Bp, out_dim), jnp.float32),
        grid=grid,
        in_specs=in_specs,
        out_specs=out_spec,
        compiler_params=pltpu.CompilerParams(
            dimension_semantics=("parallel",),   # batch steps are independent
            vmem_limit_bytes=vmem_limit),
        cost_estimate=cost,
    )(*operands)

    if Bp != B:
        out = out[:B]
    return out


def init_params(layer_sizes, key):
    """Deterministic init mirroring the module's shapes.

    Hidden layers: kaiming_uniform_ (relu gain); last layer: PyTorch default
    Linear init (uniform +/- 1/sqrt(fan_in)).  Weights returned as (in, out).
    """
    weights, biases = [], []
    num_layers = len(layer_sizes) - 1
    for i in range(num_layers):
        fan_in, fan_out = layer_sizes[i], layer_sizes[i + 1]
        key, kw, kb = jax.random.split(key, 3)
        if i < num_layers - 1:
            bound = (2.0 ** 0.5) * (3.0 / fan_in) ** 0.5   # kaiming uniform, relu gain
        else:
            bound = 1.0 / (fan_in ** 0.5)                  # torch default Linear init
        w = jax.random.uniform(kw, (fan_in, fan_out), jnp.float32, -bound, bound)
        b_bound = 1.0 / (fan_in ** 0.5)
        b = jax.random.uniform(kb, (1, fan_out), jnp.float32, -b_bound, b_bound)
        weights.append(w)
        biases.append(b)
    return weights, biases


def reference_forward(x, weights, biases, softmax_output=False):
    h = x.astype(jnp.float32)
    for i, (w, b) in enumerate(zip(weights, biases)):
        h = h @ w.astype(jnp.float32) + b
        if i < len(weights) - 1:
            h = jnp.maximum(h, 0.0)
    if softmax_output:
        h = jax.nn.softmax(h, axis=1)
    return h


def reference_forward_bf16(x, weights, biases):
    """Reference with bf16 operands / f32 accumulation (matches bf16 kernel path)."""
    h = x.astype(jnp.float32)
    for i, (w, b) in enumerate(zip(weights, biases)):
        h = jnp.dot(h.astype(jnp.bfloat16), w.astype(jnp.bfloat16),
                    preferred_element_type=jnp.float32) + b
        if i < len(weights) - 1:
            h = jnp.maximum(h, 0.0)
    return h


if __name__ == "__main__":
    # Small DQN-style MLP: 32 -> 64 -> 64 -> 4.
    layer_sizes = [32, 64, 64, 4]

    key = jax.random.PRNGKey(0)
    key, k_params = jax.random.split(key)
    raw_weights, raw_biases = init_params(layer_sizes, k_params)

    # One-time parameter preparation (hoisted out of the jitted forward).
    w_f32, b_f32 = prepare_params(raw_weights, raw_biases, jnp.float32)

    fwd = jax.jit(functools.partial(custom_network_forward, softmax_output=False))
    fwd_sm = jax.jit(functools.partial(custom_network_forward, softmax_output=True))

    # --- case 1: tiny inference batch, no softmax (module default), f32 ---
    key, kx = jax.random.split(key)
    x_small = jax.random.normal(kx, (8, layer_sizes[0]), jnp.float32)
    out1 = jax.block_until_ready(fwd(x_small, w_f32, b_f32))
    ref1 = reference_forward(x_small, w_f32, b_f32, softmax_output=False)
    assert out1.shape == (8, layer_sizes[-1])
    assert jnp.allclose(out1, ref1, atol=1e-4, rtol=1e-4), "f32 path mismatch"

    # --- case 2: mid-size stacked batch with softmax(dim=1) ---
    key, kx2 = jax.random.split(key)
    x_mid = jax.random.normal(kx2, (300, layer_sizes[0]), jnp.float32)
    out2 = jax.block_until_ready(fwd_sm(x_mid, w_f32, b_f32))
    ref2 = reference_forward(x_mid, w_f32, b_f32, softmax_output=True)
    assert out2.shape == (300, layer_sizes[-1])
    assert jnp.allclose(out2, ref2, atol=5e-3, rtol=5e-3), "softmax path mismatch"
    assert jnp.allclose(jnp.sum(out2, axis=1), 1.0, atol=5e-3), "softmax rows must sum to 1"

    # --- case 3: large stacked batch -> multi-step batch grid (TB=1024, 2 steps) ---
    key, kx3 = jax.random.split(key)
    x_big = jax.random.normal(kx3, (2048, layer_sizes[0]), jnp.float32)
    out3 = jax.block_until_ready(fwd(x_big, w_f32, b_f32))
    ref3 = reference_forward(x_big, w_f32, b_f32, softmax_output=False)
    assert out3.shape == (2048, layer_sizes[-1])
    assert jnp.allclose(out3, ref3, atol=1e-4, rtol=1e-4), "multi-step grid mismatch"

    # --- case 4: optional bf16 weights (v6e/v7x MXU fast path; keep f32 on v5e) ---
    w_bf16, b_bf16 = prepare_params(raw_weights, raw_biases, jnp.bfloat16)
    out4 = jax.block_until_ready(fwd(x_small, w_bf16, b_bf16))
    ref4 = reference_forward_bf16(x_small, w_f32, b_f32)
    assert jnp.allclose(out4, ref4, atol=1e-2, rtol=1e-2), "bf16 path mismatch"

    print("KERNEL_OK")
</pallas_src>

<mosaic_0001>
module attributes {stable_mosaic.version = 11 : i64} {
  func.func @kernel(%arg0: i32, %arg1: memref<8x32xf32, #tpu.memory_space<vmem>>, %arg2: memref<32x64xf32, #tpu.memory_space<vmem>>, %arg3: memref<1x64xf32, #tpu.memory_space<vmem>>, %arg4: memref<64x64xf32, #tpu.memory_space<vmem>>, %arg5: memref<1x64xf32, #tpu.memory_space<vmem>>, %arg6: memref<64x4xf32, #tpu.memory_space<vmem>>, %arg7: memref<1x4xf32, #tpu.memory_space<vmem>>, %arg8: memref<8x4xf32, #tpu.memory_space<vmem>>) attributes {dimension_semantics = [#tpu.dimension_semantics<parallel>], iteration_bounds = array<i64: 1>, scalar_prefetch = 0 : i64, scratch_operands = 0 : i64, tpu.core_type = #tpu.core_type<tc>, window_params = [{transform_indices = @transform_0, window_bounds = array<i64: 8, 32>}, {pipeline_mode = #tpu.pipeline_mode<synchronous>, transform_indices = @transform_1, window_bounds = array<i64: 32, 64>}, {pipeline_mode = #tpu.pipeline_mode<synchronous>, transform_indices = @transform_2, window_bounds = array<i64: 1, 64>}, {pipeline_mode = #tpu.pipeline_mode<synchronous>, transform_indices = @transform_3, window_bounds = array<i64: 64, 64>}, {pipeline_mode = #tpu.pipeline_mode<synchronous>, transform_indices = @transform_4, window_bounds = array<i64: 1, 64>}, {pipeline_mode = #tpu.pipeline_mode<synchronous>, transform_indices = @transform_5, window_bounds = array<i64: 64, 4>}, {pipeline_mode = #tpu.pipeline_mode<synchronous>, transform_indices = @transform_6, window_bounds = array<i64: 1, 4>}, {transform_indices = @transform_7, window_bounds = array<i64: 8, 4>}]} {
    %c0 = arith.constant 0 : index
    %c0_0 = arith.constant 0 : index
    %0 = vector.load %arg1[%c0, %c0_0] : memref<8x32xf32, #tpu.memory_space<vmem>>, vector<8x32xf32>
    %c0_1 = arith.constant 0 : index
    %c0_2 = arith.constant 0 : index
    %1 = vector.load %arg2[%c0_1, %c0_2] : memref<32x64xf32, #tpu.memory_space<vmem>>, vector<32x64xf32>
    %cst = arith.constant dense<0.000000e+00> : vector<8x64xf32>
    %2 = tpu.matmul %0, %1, %cst {dimension_numbers = #tpu.dot_dimension_numbers<[1], [0], [0], [1], [0, 0, 1, 1], [], []>} : vector<8x32xf32>, vector<32x64xf32>, vector<8x64xf32> -> vector<8x64xf32>
    %c0_3 = arith.constant 0 : index
    %c0_4 = arith.constant 0 : index
    %3 = vector.load %arg3[%c0_3, %c0_4] : memref<1x64xf32, #tpu.memory_space<vmem>>, vector<1x64xf32>
    %4 = vector.broadcast %3 : vector<1x64xf32> to vector<8x64xf32>
    %5 = arith.addf %2, %4 : vector<8x64xf32>
    %cst_5 = arith.constant 0.000000e+00 : f32
    %6 = vector.broadcast %cst_5 : f32 to vector<8x64xf32>
    %7 = arith.maximumf %5, %6 : vector<8x64xf32>
    %c0_6 = arith.constant 0 : index
    %c0_7 = arith.constant 0 : index
    %8 = vector.load %arg4[%c0_6, %c0_7] : memref<64x64xf32, #tpu.memory_space<vmem>>, vector<64x64xf32>
    %cst_8 = arith.constant dense<0.000000e+00> : vector<8x64xf32>
    %9 = tpu.matmul %7, %8, %cst_8 {dimension_numbers = #tpu.dot_dimension_numbers<[1], [0], [0], [1], [0, 0, 1, 1], [], []>} : vector<8x64xf32>, vector<64x64xf32>, vector<8x64xf32> -> vector<8x64xf32>
    %c0_9 = arith.constant 0 : index
    %c0_10 = arith.constant 0 : index
    %10 = vector.load %arg5[%c0_9, %c0_10] : memref<1x64xf32, #tpu.memory_space<vmem>>, vector<1x64xf32>
    %11 = vector.broadcast %10 : vector<1x64xf32> to vector<8x64xf32>
    %12 = arith.addf %9, %11 : vector<8x64xf32>
    %cst_11 = arith.constant 0.000000e+00 : f32
    %13 = vector.broadcast %cst_11 : f32 to vector<8x64xf32>
    %14 = arith.maximumf %12, %13 : vector<8x64xf32>
    %c0_12 = arith.constant 0 : index
    %c0_13 = arith.constant 0 : index
    %15 = vector.load %arg6[%c0_12, %c0_13] : memref<64x4xf32, #tpu.memory_space<vmem>>, vector<64x4xf32>
    %cst_14 = arith.constant dense<0.000000e+00> : vector<8x4xf32>
    %16 = tpu.matmul %14, %15, %cst_14 {dimension_numbers = #tpu.dot_dimension_numbers<[1], [0], [0], [1], [0, 0, 1, 1], [], []>} : vector<8x64xf32>, vector<64x4xf32>, vector<8x4xf32> -> vector<8x4xf32>
    %c0_15 = arith.constant 0 : index
    %c0_16 = arith.constant 0 : index
    %17 = vector.load %arg7[%c0_15, %c0_16] : memref<1x4xf32, #tpu.memory_space<vmem>>, vector<1x4xf32>
    %18 = vector.broadcast %17 : vector<1x4xf32> to vector<8x4xf32>
    %19 = arith.addf %16, %18 : vector<8x4xf32>
    %c0_17 = arith.constant 0 : index
    %c0_18 = arith.constant 0 : index
    %20 = vector.load %arg8[%c0_17, %c0_18] : memref<8x4xf32, #tpu.memory_space<vmem>>, vector<8x4xf32>
    tpu.vector_store %arg8[%c0_17, %c0_18], %19 {strides = array<i32>} : memref<8x4xf32, #tpu.memory_space<vmem>>, vector<8x4xf32>,
    return
  }
  func.func @transform_0(%arg0: i32) -> (i32, i32) {
    %c0_i32 = arith.constant 0 : i32
    %c0_i32_0 = arith.constant 0 : i32
    return %arg0, %c0_i32 : i32, i32
  }
  func.func @transform_1(%arg0: i32) -> (i32, i32) {
    %c0_i32 = arith.constant 0 : i32
    %c0_i32_0 = arith.constant 0 : i32
    %c0_i32_1 = arith.constant 0 : i32
    return %c0_i32, %c0_i32_0 : i32, i32
  }
  func.func @transform_2(%arg0: i32) -> (i32, i32) {
    %c0_i32 = arith.constant 0 : i32
    %c0_i32_0 = arith.constant 0 : i32
    %c0_i32_1 = arith.constant 0 : i32
    return %c0_i32, %c0_i32_0 : i32, i32
  }
  func.func @transform_3(%arg0: i32) -> (i32, i32) {
    %c0_i32 = arith.constant 0 : i32
    %c0_i32_0 = arith.constant 0 : i32
    %c0_i32_1 = arith.constant 0 : i32
    return %c0_i32, %c0_i32_0 : i32, i32
  }
  func.func @transform_4(%arg0: i32) -> (i32, i32) {
    %c0_i32 = arith.constant 0 : i32
    %c0_i32_0 = arith.constant 0 : i32
    %c0_i32_1 = arith.constant 0 : i32
    return %c0_i32, %c0_i32_0 : i32, i32
  }
  func.func @transform_5(%arg0: i32) -> (i32, i32) {
    %c0_i32 = arith.constant 0 : i32
    %c0_i32_0 = arith.constant 0 : i32
    %c0_i32_1 = arith.constant 0 : i32
    return %c0_i32, %c0_i32_0 : i32, i32
  }
  func.func @transform_6(%arg0: i32) -> (i32, i32) {
    %c0_i32 = arith.constant 0 : i32
    %c0_i32_0 = arith.constant 0 : i32
    %c0_i32_1 = arith.constant 0 : i32
    return %c0_i32, %c0_i32_0 : i32, i32
  }
  func.func @transform_7(%arg0: i32) -> (i32, i32) {
    %c0_i32 = arith.constant 0 : i32
    %c0_i32_0 = arith.constant 0 : i32
    return %arg0, %c0_i32 : i32, i32
  }
}

</mosaic_0001>

<llo_original>
// kernel: custom_network_forward.1
$region0: #{custom_network_forward.1}
  #allocation0 [shape = 'u32[]', space=smem, size = 0x4, offset = 0x4, fixed_abs, tag = 'smem constant byte address 0x4 - core index']
  #allocation1 [shape = 'u32[144,128]{1,0:T(1,128)}', space=vmem, size = 0x12000, scoped, tag = 'internal scratch']
  %s0 = inlined_call_operand.hbm [shape: f32[8,32], index: 0, kind: input, shape index: {}]
  %s1 = inlined_call_operand.hbm [shape: f32[32,64], index: 1, kind: input, shape index: {}]
  %s2 = inlined_call_operand.vmem [shape: f32[1,64], index: 2, kind: input, shape index: {}]
  %s3 = inlined_call_operand.vmem [shape: f32[64,64], index: 3, kind: input, shape index: {}]
  %s4 = inlined_call_operand.vmem [shape: f32[1,64], index: 4, kind: input, shape index: {}]
  %s5 = inlined_call_operand.vmem [shape: f32[64,4], index: 5, kind: input, shape index: {}]
  %s6 = inlined_call_operand.vmem [shape: f32[1,4], index: 6, kind: input, shape index: {}]
  %s7 = inlined_call_operand.vmem [shape: f32[8,4], index: 7, kind: output, shape index: {}]
  %s8 = sld [smem:[#allocation0]]
  $region46: #{custom_network_forward.1} parent=0
    _
  %s10 = ssub.s32 1, %s8
  %s11 = scalar_select 0, %s10, %s8
  $region1: #{custom_network_forward.1} parent=0
    #allocation2 [shape = 'u8[4096]{0}', space=vmem, size = 0x1000, scoped, tag = 'input window, operand 0, single buffered']
    #allocation3 [shape = 's32[1]{0}', space=sflag, size = 0x4, scoped, tag = 'scoped memory for custom_network_forward.1']
    #allocation4 [shape = 'u8[16384]{0}', space=vmem, size = 0x4000, scoped, tag = 'input window, operand 1, single buffered']
    #allocation5 [shape = 's32[1]{0}', space=sflag, size = 0x4, scoped, tag = 'scoped memory for custom_network_forward.1']
    %12 = vsyncpa [#allocation3], 0
    %13 = vsyncpa [#allocation5], 0
    // Predicated region
    $region2: #{custom_network_forward.1} parent=1 // pred_check
      _
    $region3: #{custom_network_forward.1} parent=1 // pred_check_branch
      %15 = sbr.rel (0) target = $region5
    $region4: #{custom_network_forward.1} parent=1 // pred_region
      %s17 = ssub.s32 128, 128
      %18 = vsyncadd [#allocation3], %s17
      %s20 = sshll.u32 [#allocation2], 4
      %s21 = int_to_ptr.vmem [resolvable:$true] %s20
      %23 = dma.hbm_to_vmem [thread:$0]  %s0, 128, %s21, [#allocation3]
    $region5: #{custom_network_forward.1} parent=1 // pred_fallthru
      _
    // Predicated region
    $region6: #{custom_network_forward.1} parent=1 // pred_check
      _
    $region7: #{custom_network_forward.1} parent=1 // pred_check_branch
      %25 = sbr.rel (0) target = $region9
    $region8: #{custom_network_forward.1} parent=1 // pred_region
      %s27 = ssub.s32 512, 512
      %28 = vsyncadd [#allocation5], %s27
      %s29 = sshll.u32 [#allocation4], 4
      %s30 = int_to_ptr.vmem [resolvable:$true] %s29
      %35 = dma.hbm_to_vmem [thread:$0]  %s1, 512, %s30, [#allocation5], 128, 128, 8
    $region9: #{custom_network_forward.1} parent=1 // pred_fallthru
      _
    // Predicated region
    $region10: #{custom_network_forward.1} parent=1 // pred_check
      _
    $region11: #{custom_network_forward.1} parent=1 // pred_check_branch
      %37 = sbr.rel (0) target = $region13
    $region12: #{custom_network_forward.1} parent=1 // pred_region
      _
    $region13: #{custom_network_forward.1} parent=1 // pred_fallthru
      _
    // Predicated region
    $region14: #{custom_network_forward.1} parent=1 // pred_check
      _
    $region15: #{custom_network_forward.1} parent=1 // pred_check_branch
      %39 = sbr.rel (0) target = $region17
    $region16: #{custom_network_forward.1} parent=1 // pred_region
      _
    $region17: #{custom_network_forward.1} parent=1 // pred_fallthru
      _
    // Predicated region
    $region18: #{custom_network_forward.1} parent=1 // pred_check
      _
    $region19: #{custom_network_forward.1} parent=1 // pred_check_branch
      %41 = sbr.rel (0) target = $region21
    $region20: #{custom_network_forward.1} parent=1 // pred_region
      _
    $region21: #{custom_network_forward.1} parent=1 // pred_fallthru
      _
    // Predicated region
    $region22: #{custom_network_forward.1} parent=1 // pred_check
      _
    $region23: #{custom_network_forward.1} parent=1 // pred_check_branch
      %43 = sbr.rel (0) target = $region25
    $region24: #{custom_network_forward.1} parent=1 // pred_region
      _
    $region25: #{custom_network_forward.1} parent=1 // pred_fallthru
      _
    // Predicated region
    $region26: #{custom_network_forward.1} parent=1 // pred_check
      _
    $region27: #{custom_network_forward.1} parent=1 // pred_check_branch
      %45 = sbr.rel (0) target = $region29
    $region28: #{custom_network_forward.1} parent=1 // pred_region
      _
    $region29: #{custom_network_forward.1} parent=1 // pred_fallthru
      _
    // Predicated region
    $region30: #{custom_network_forward.1} parent=1 // pred_check
      _
    $region31: #{custom_network_forward.1} parent=1 // pred_check_branch
      %47 = sbr.rel (0) target = $region33
    $region32: #{custom_network_forward.1} parent=1 // pred_region
      %48 = dma.done [#allocation3], 128
    $region33: #{custom_network_forward.1} parent=1 // pred_fallthru
      _
    // Predicated region
    $region34: #{custom_network_forward.1} parent=1 // pred_check
      _
    $region35: #{custom_network_forward.1} parent=1 // pred_check_branch
      %50 = sbr.rel (0) target = $region37
    $region36: #{custom_network_forward.1} parent=1 // pred_region
      %51 = dma.done [#allocation5], 512
    $region37: #{custom_network_forward.1} parent=1 // pred_fallthru
      _
    %v52 = vld [vmem:[#allocation2] sm:$0xff]
    %v53 = vld [vmem:[#allocation4] sm:$0xff]
    %v54 = vld [vmem:[#allocation4 + $0x8] sm:$0xff]
    %v55 = vld [vmem:[#allocation4 + $0x10] sm:$0xff]
    %v56 = vld [vmem:[#allocation4 + $0x18] sm:$0xff]
    %v57 = vld [vmem:[%s2] sm:$0x1]
    %v59 = vlaneseq
    %v60 = vshrl.u32 %v59, 7
    %v61 = vsub.s32 0, %v60
    %v62 = vrot.slane %v57, %v61
    %vm64 = vcmask 261120
    %v66 = vsel %vm64, %v52, 0
    %68 = vmatprep.subr.mxu0 0.0
    %69 = vmatpush1.msra.mxu0 0.0
    %70 = vmatprep.subr.mxu0 0.0
    %71 = vmatpush1.msra.mxu0 0.0
    %72 = vmatprep.subr.mxu0 0.0
    %73 = vmatpush1.msra.mxu0 0.0
    %74 = vmatprep.subr.mxu0 0.0
    %75 = vmatpush1.msra.mxu0 0.0
    %76 = vmatprep.subr.mxu0 0.0
    %77 = vmatpush1.msra.mxu0 0.0
    %78 = vmatprep.subr.mxu0 0.0
    %79 = vmatpush1.msra.mxu0 0.0
    %80 = vmatprep.subr.mxu0 0.0
    %81 = vmatpush1.msra.mxu0 0.0
    %82 = vmatprep.subr.mxu0 0.0
    %83 = vmatpush1.msra.mxu0 0.0
    %84 = vmatprep.subr.mxu0 0.0
    %85 = vmatpush1.msra.mxu0 0.0
    %86 = vmatprep.subr.mxu0 0.0
    %87 = vmatpush1.msra.mxu0 0.0
    %88 = vmatprep.subr.mxu0 0.0
    %89 = vmatpush1.msra.mxu0 0.0
    %90 = vmatprep.subr.mxu0 0.0
    %91 = vmatpush1.msra.mxu0 0.0
    %92 = vmatprep.subr.mxu0 0.0
    %93 = vmatpush1.msra.mxu0 %v56
    %94 = vmatprep.subr.mxu0 0.0
    %95 = vmatpush1.msra.mxu0 %v55
    %96 = vmatprep.subr.mxu0 0.0
    %97 = vmatpush1.msra.mxu0 %v54
    %98 = vmatprep.subr.mxu0 0.0
    %99 = vmatpush1.msra.mxu0 %v53
    %100 = vmatprep.subr.mxu0 0.0
    %101 = vmatpush2.msra.mxu0 0.0
    %102 = vmatprep.subr.mxu0 0.0
    %103 = vmatpush2.msra.mxu0 0.0
    %104 = vmatprep.subr.mxu0 0.0
    %105 = vmatpush2.msra.mxu0 0.0
    %106 = vmatprep.subr.mxu0 0.0
    %107 = vmatpush2.msra.mxu0 0.0
    %108 = vmatprep.subr.mxu0 0.0
    %109 = vmatpush2.msra.mxu0 0.0
    %110 = vmatprep.subr.mxu0 0.0
    %111 = vmatpush2.msra.mxu0 0.0
    %112 = vmatprep.subr.mxu0 0.0
    %113 = vmatpush2.msra.mxu0 0.0
    %114 = vmatprep.subr.mxu0 0.0
    %115 = vmatpush2.msra.mxu0 0.0
    %116 = vmatprep.subr.mxu0 0.0
    %117 = vmatpush2.msra.mxu0 0.0
    %118 = vmatprep.subr.mxu0 0.0
    %119 = vmatpush2.msra.mxu0 0.0
    %120 = vmatprep.subr.mxu0 0.0
    %121 = vmatpush2.msra.mxu0 0.0
    %122 = vmatprep.subr.mxu0 0.0
    %123 = vmatpush2.msra.mxu0 0.0
    %124 = vmatprep.subr.mxu0 0.0
    %125 = vmatpush2.msra.mxu0 0.0
    %126 = vmatprep.subr.mxu0 0.0
    %127 = vmatpush2.msra.mxu0 0.0
    %128 = vmatprep.subr.mxu0 0.0
    %129 = vmatpush2.msra.mxu0 0.0
    %130 = vmatprep.subr.mxu0 0.0
    %131 = vmatpush2.msra.mxu0 0.0
    %132 = vmatprep.mubr.f32.mxu0 0.0
    %133 = vmatmul.mubr.f32.gmra.mxu0 %v66
    %v134 = vpop.f32.mrf.mxu0
    %v135 = vadd.f32 %v62, %v134
    %v136 = vpop.f32.mrf.mxu0
    %137 = vdwg.mxu0
    %v138 = vmax.f32 %v135, 0.0
    %v139 = vld [vmem:[%s3] sm:$0xff]
    %v140 = vld [vmem:[%s3 + $0x8] sm:$0xff]
    %v141 = vld [vmem:[%s3 + $0x10] sm:$0xff]
    %v142 = vld [vmem:[%s3 + $0x18] sm:$0xff]
    %v143 = vld [vmem:[%s3 + $0x20] sm:$0xff]
    %v144 = vld [vmem:[%s3 + $0x28] sm:$0xff]
    %v145 = vld [vmem:[%s3 + $0x30] sm:$0xff]
    %v146 = vld [vmem:[%s3 + $0x38] sm:$0xff]
    %v147 = vld [vmem:[%s4] sm:$0x1]
    %v149 = vlaneseq
    %v150 = vshrl.u32 %v149, 7
    %v151 = vsub.s32 0, %v150
    %v152 = vrot.slane %v147, %v151
    %vm154 = vcmask 523264
    %v156 = vsel %vm154, %v138, 0
    %158 = vmatprep.subr.mxu0 0.0
    %159 = vmatpush1.msra.mxu0 0.0
    %160 = vmatprep.subr.mxu0 0.0
    %161 = vmatpush1.msra.mxu0 0.0
    %162 = vmatprep.subr.mxu0 0.0
    %163 = vmatpush1.msra.mxu0 0.0
    %164 = vmatprep.subr.mxu0 0.0
    %165 = vmatpush1.msra.mxu0 0.0
    %166 = vmatprep.subr.mxu0 0.0
    %167 = vmatpush1.msra.mxu0 0.0
    %168 = vmatprep.subr.mxu0 0.0
    %169 = vmatpush1.msra.mxu0 0.0
    %170 = vmatprep.subr.mxu0 0.0
    %171 = vmatpush1.msra.mxu0 0.0
    %172 = vmatprep.subr.mxu0 0.0
    %173 = vmatpush1.msra.mxu0 0.0
    %174 = vmatprep.subr.mxu0 0.0
    %175 = vmatpush1.msra.mxu0 %v146
    %176 = vmatprep.subr.mxu0 0.0
    %177 = vmatpush1.msra.mxu0 %v145
    %178 = vmatprep.subr.mxu0 0.0
    %179 = vmatpush1.msra.mxu0 %v144
    %180 = vmatprep.subr.mxu0 0.0
    %181 = vmatpush1.msra.mxu0 %v143
    %182 = vmatprep.subr.mxu0 0.0
    %183 = vmatpush1.msra.mxu0 %v142
    %184 = vmatprep.subr.mxu0 0.0
    %185 = vmatpush1.msra.mxu0 %v141
    %186 = vmatprep.subr.mxu0 0.0
    %187 = vmatpush1.msra.mxu0 %v140
    %188 = vmatprep.subr.mxu0 0.0
    %189 = vmatpush1.msra.mxu0 %v139
    %190 = vmatprep.subr.mxu0 0.0
    %191 = vmatpush2.msra.mxu0 0.0
    %192 = vmatprep.subr.mxu0 0.0
    %193 = vmatpush2.msra.mxu0 0.0
    %194 = vmatprep.subr.mxu0 0.0
    %195 = vmatpush2.msra.mxu0 0.0
    %196 = vmatprep.subr.mxu0 0.0
    %197 = vmatpush2.msra.mxu0 0.0
    %198 = vmatprep.subr.mxu0 0.0
    %199 = vmatpush2.msra.mxu0 0.0
    %200 = vmatprep.subr.mxu0 0.0
    %201 = vmatpush2.msra.mxu0 0.0
    %202 = vmatprep.subr.mxu0 0.0
    %203 = vmatpush2.msra.mxu0 0.0
    %204 = vmatprep.subr.mxu0 0.0
    %205 = vmatpush2.msra.mxu0 0.0
    %206 = vmatprep.subr.mxu0 0.0
    %207 = vmatpush2.msra.mxu0 0.0
    %208 = vmatprep.subr.mxu0 0.0
    %209 = vmatpush2.msra.mxu0 0.0
    %210 = vmatprep.subr.mxu0 0.0
    %211 = vmatpush2.msra.mxu0 0.0
    %212 = vmatprep.subr.mxu0 0.0
    %213 = vmatpush2.msra.mxu0 0.0
    %214 = vmatprep.subr.mxu0 0.0
    %215 = vmatpush2.msra.mxu0 0.0
    %216 = vmatprep.subr.mxu0 0.0
    %217 = vmatpush2.msra.mxu0 0.0
    %218 = vmatprep.subr.mxu0 0.0
    %219 = vmatpush2.msra.mxu0 0.0
    %220 = vmatprep.subr.mxu0 0.0
    %221 = vmatpush2.msra.mxu0 0.0
    %222 = vmatprep.mubr.f32.mxu0 0.0
    %223 = vmatmul.mubr.f32.gmra.mxu0 %v156
    %v224 = vpop.f32.mrf.mxu0
    %v225 = vadd.f32 %v152, %v224
    %v226 = vpop.f32.mrf.mxu0
    %227 = vdwg.mxu0
    %v228 = vmax.f32 %v225, 0.0
    %v229 = vld [vmem:[%s5] sm:$0xff]
    %v230 = vld [vmem:[%s5 + $0x8] sm:$0xff]
    %v231 = vld [vmem:[%s5 + $0x10] sm:$0xff]
    %v232 = vld [vmem:[%s5 + $0x18] sm:$0xff]
    %v233 = vld [vmem:[%s5 + $0x20] sm:$0xff]
    %v234 = vld [vmem:[%s5 + $0x28] sm:$0xff]
    %v235 = vld [vmem:[%s5 + $0x30] sm:$0xff]
    %v236 = vld [vmem:[%s5 + $0x38] sm:$0xff]
    %v237 = vld [vmem:[%s6] sm:$0x1]
    %v239 = vlaneseq
    %v240 = vshrl.u32 %v239, 7
    %v241 = vsub.s32 0, %v240
    %v242 = vrot.slane %v237, %v241
    %v245 = vsel %vm154, %v228, 0
    %247 = vmatprep.subr.mxu0 0.0
    %248 = vmatpush1.msra.mxu0 0.0
    %249 = vmatprep.subr.mxu0 0.0
    %250 = vmatpush1.msra.mxu0 0.0
    %251 = vmatprep.subr.mxu0 0.0
    %252 = vmatpush1.msra.mxu0 0.0
    %253 = vmatprep.subr.mxu0 0.0
    %254 = vmatpush1.msra.mxu0 0.0
    %255 = vmatprep.subr.mxu0 0.0
    %256 = vmatpush1.msra.mxu0 0.0
    %257 = vmatprep.subr.mxu0 0.0
    %258 = vmatpush1.msra.mxu0 0.0
    %259 = vmatprep.subr.mxu0 0.0
    %260 = vmatpush1.msra.mxu0 0.0
    %261 = vmatprep.subr.mxu0 0.0
    %262 = vmatpush1.msra.mxu0 0.0
    %263 = vmatprep.subr.mxu0 0.0
    %264 = vmatpush1.msra.mxu0 %v236
    %265 = vmatprep.subr.mxu0 0.0
    %266 = vmatpush1.msra.mxu0 %v235
    %267 = vmatprep.subr.mxu0 0.0
    %268 = vmatpush1.msra.mxu0 %v234
    %269 = vmatprep.subr.mxu0 0.0
    %270 = vmatpush1.msra.mxu0 %v233
    %271 = vmatprep.subr.mxu0 0.0
    %272 = vmatpush1.msra.mxu0 %v232
    %273 = vmatprep.subr.mxu0 0.0
    %274 = vmatpush1.msra.mxu0 %v231
    %275 = vmatprep.subr.mxu0 0.0
    %276 = vmatpush1.msra.mxu0 %v230
    %277 = vmatprep.subr.mxu0 0.0
    %278 = vmatpush1.msra.mxu0 %v229
    %279 = vmatprep.subr.mxu0 0.0
    %280 = vmatpush2.msra.mxu0 0.0
    %281 = vmatprep.subr.mxu0 0.0
    %282 = vmatpush2.msra.mxu0 0.0
    %283 = vmatprep.subr.mxu0 0.0
    %284 = vmatpush2.msra.mxu0 0.0
    %285 = vmatprep.subr.mxu0 0.0
    %286 = vmatpush2.msra.mxu0 0.0
    %287 = vmatprep.subr.mxu0 0.0
    %288 = vmatpush2.msra.mxu0 0.0
    %289 = vmatprep.subr.mxu0 0.0
    %290 = vmatpush2.msra.mxu0 0.0
    %291 = vmatprep.subr.mxu0 0.0
    %292 = vmatpush2.msra.mxu0 0.0
    %293 = vmatprep.subr.mxu0 0.0
    %294 = vmatpush2.msra.mxu0 0.0
    %295 = vmatprep.subr.mxu0 0.0
    %296 = vmatpush2.msra.mxu0 0.0
    %297 = vmatprep.subr.mxu0 0.0
    %298 = vmatpush2.msra.mxu0 0.0
    %299 = vmatprep.subr.mxu0 0.0
    %300 = vmatpush2.msra.mxu0 0.0
    %301 = vmatprep.subr.mxu0 0.0
    %302 = vmatpush2.msra.mxu0 0.0
    %303 = vmatprep.subr.mxu0 0.0
    %304 = vmatpush2.msra.mxu0 0.0
    %305 = vmatprep.subr.mxu0 0.0
    %306 = vmatpush2.msra.mxu0 0.0
    %307 = vmatprep.subr.mxu0 0.0
    %308 = vmatpush2.msra.mxu0 0.0
    %309 = vmatprep.subr.mxu0 0.0
    %310 = vmatpush2.msra.mxu0 0.0
    %311 = vmatprep.mubr.f32.mxu0 0.0
    %312 = vmatmul.mubr.f32.gmra.mxu0 %v245
    %v313 = vpop.f32.mrf.mxu0
    %v314 = vadd.f32 %v242, %v313
    %v315 = vpop.f32.mrf.mxu0
    %316 = vdwg.mxu0
    %vm317 = vcmask 31744
    %318 = vst.msk [vmem:[%s7] sm:$0xff] %vm317, %v314
    // Predicated region
    $region38: #{custom_network_forward.1} parent=1 // pred_check
      _
    $region39: #{custom_network_forward.1} parent=1 // pred_check_branch
      %320 = sbr.rel (0) target = $region41
    $region40: #{custom_network_forward.1} parent=1 // pred_region
      _
    $region41: #{custom_network_forward.1} parent=1 // pred_fallthru
      _
    // Predicated region
    $region42: #{custom_network_forward.1} parent=1 // pred_check
      _
    $region43: #{custom_network_forward.1} parent=1 // pred_check_branch
      %322 = sbr.rel (0) target = $region45
    $region44: #{custom_network_forward.1} parent=1 // pred_region
      _
    $region45: #{custom_network_forward.1} parent=1 // pred_fallthru
      _
    %323 = vsyncpa [#allocation3], 1
    %324 = vsyncpa [#allocation5], 1

</llo_original>
